<compile_context>
chip_gen: v5e
topology: v5e:2x2
jax: 0.10.0
libtpu: 0.0.40
codegen_flags: <defaults>
</compile_context>

<pallas_src>
import jax
import jax.numpy as jnp
import numpy as np
from jax.experimental import pallas as pl
from jax.experimental.pallas import tpu as pltpu

LANES = 128
TILE_POINTS = 4096                      # points per grid step (multiple of 32*128)
ROWS_PER_TILE = TILE_POINTS // LANES    # 32 sublane rows: native int8 tile height


def _crop_mask_kernel(bounds_ref, coords_ref, mask_ref):
    # bounds_ref: SMEM (6,) int32 = [lo_x, lo_y, lo_z, hi_x, hi_y, hi_z]
    # coords_ref: VMEM (3, ROWS_PER_TILE, 128) int32 (x / y / z planes)
    # mask_ref:   VMEM (ROWS_PER_TILE, 128) int8
    x = coords_ref[0]
    y = coords_ref[1]
    z = coords_ref[2]
    lo_x, lo_y, lo_z = bounds_ref[0], bounds_ref[1], bounds_ref[2]
    hi_x, hi_y, hi_z = bounds_ref[3], bounds_ref[4], bounds_ref[5]
    ok = (x >= lo_x) & (x < hi_x)
    ok &= (y >= lo_y) & (y < hi_y)
    ok &= (z >= lo_z) & (z < hi_z)
    mask_ref[...] = jnp.where(ok, 1, 0).astype(jnp.int8)


def sparse_crop_mask(coords, loc_min, loc_max):
    """Per-point validity mask (int8, 1 = keep) computed with a Pallas kernel."""
    n = coords.shape[0]
    n_pad = ((n + TILE_POINTS - 1) // TILE_POINTS) * TILE_POINTS
    sentinel = jnp.iinfo(jnp.int32).max  # padded rows always fail `x < hi_x`

    xyz_t = jnp.transpose(coords[:, :3].astype(jnp.int32))       # (3, n)
    if n_pad != n:
        xyz_t = jnp.pad(xyz_t, ((0, 0), (0, n_pad - n)), constant_values=sentinel)
    xyz_blk = xyz_t.reshape(3, n_pad // LANES, LANES)            # (3, n_pad/128, 128)

    bounds = jnp.concatenate([
        jnp.asarray(loc_min, dtype=jnp.int32).reshape(3),
        jnp.asarray(loc_max, dtype=jnp.int32).reshape(3),
    ])                                                           # (6,) int32

    mask2d = pl.pallas_call(
        _crop_mask_kernel,
        out_shape=jax.ShapeDtypeStruct((n_pad // LANES, LANES), jnp.int8),
        grid=(n_pad // TILE_POINTS,),
        in_specs=[
            pl.BlockSpec(memory_space=pltpu.MemorySpace.SMEM),              # bounds
            pl.BlockSpec((3, ROWS_PER_TILE, LANES), lambda i: (0, i, 0)),   # coords
        ],
        out_specs=pl.BlockSpec((ROWS_PER_TILE, LANES), lambda i: (i, 0)),
        compiler_params=pltpu.CompilerParams(dimension_semantics=("parallel",)),
    )(bounds, xyz_blk)

    return mask2d.reshape(n_pad)[:n]


def sparse_crop(features, coords, stride, loc_min, loc_max):
    """SparseCrop.forward.

    The true output length is data-dependent, so the statically shaped outputs
    have the valid rows compacted to the front (original order preserved), the
    trailing rows zeroed, and `num_valid` gives the logical length; the first
    `num_valid` rows equal the PyTorch result exactly. Stride passes through.
    """
    n = coords.shape[0]
    mask = sparse_crop_mask(coords, loc_min, loc_max)            # (n,) int8
    keep = mask != 0
    positions = jnp.cumsum(mask.astype(jnp.int32)) - 1           # destination slot of each valid row
    num_valid = positions[-1] + 1
    # TODO(synk): the data-dependent boolean compaction (dynamic output length)
    # has no static-shape Pallas equivalent; done here with one cumsum + scatter.
    dest = jnp.where(keep, positions, n)                         # invalid rows -> sentinel row n
    out_coords = (
        jnp.zeros((n + 1, coords.shape[1]), coords.dtype).at[dest].set(coords)[:n]
    )
    out_features = (
        jnp.zeros((n + 1, features.shape[1]), features.dtype).at[dest].set(features)[:n]
    )
    return out_features, out_coords, num_valid, stride


if __name__ == "__main__":
    key = jax.random.PRNGKey(0)
    k_coords, k_feats = jax.random.split(key)

    N, C = 64, 32
    coords_xyz = jax.random.randint(k_coords, (N, 3), 0, 16, dtype=jnp.int32)
    batch_idx = jnp.zeros((N, 1), dtype=jnp.int32)
    coords = jnp.concatenate([coords_xyz, batch_idx], axis=1)     # [N, 4]
    features = jax.random.normal(k_feats, (N, C), dtype=jnp.float32)
    stride = 1

    loc_min = (2, 2, 2)
    loc_max = (12, 12, 12)

    out_feats, out_coords, num_valid, out_stride = sparse_crop(
        features, coords, stride, loc_min, loc_max
    )
    jax.block_until_ready((out_feats, out_coords, num_valid))

    # Reference (mirrors the PyTorch spcrop exactly).
    coords_np = np.asarray(coords)
    feats_np = np.asarray(features)
    vf = (
        (coords_np[:, :3] >= np.asarray(loc_min))
        & (coords_np[:, :3] < np.asarray(loc_max))
    ).all(-1)
    ref_coords = coords_np[vf]
    ref_feats = feats_np[vf]

    k = int(num_valid)
    assert k == int(vf.sum()), (k, int(vf.sum()))
    np.testing.assert_array_equal(np.asarray(out_coords)[:k], ref_coords)
    np.testing.assert_allclose(np.asarray(out_feats)[:k], ref_feats, rtol=0, atol=0)
    np.testing.assert_array_equal(np.asarray(out_coords)[k:], 0)
    np.testing.assert_array_equal(np.asarray(out_feats)[k:], 0.0)
    assert out_stride == stride

    print("KERNEL_OK")
</pallas_src>

<mosaic_0001>
module attributes {stable_mosaic.version = 11 : i64} {
  func.func @_crop_mask_kernel(%arg0: i32, %arg1: memref<6xi32, #tpu.memory_space<smem>>, %arg2: memref<3x32x128xi32, #tpu.memory_space<vmem>>, %arg3: memref<32x128xi8, #tpu.memory_space<vmem>>) attributes {dimension_semantics = [#tpu.dimension_semantics<parallel>], iteration_bounds = array<i64: 1>, scalar_prefetch = 0 : i64, scratch_operands = 0 : i64, tpu.core_type = #tpu.core_type<tc>, window_params = [{transform_indices = @transform_0, window_bounds = array<i64: 6>}, {transform_indices = @transform_1, window_bounds = array<i64: 3, 32, 128>}, {transform_indices = @transform_2, window_bounds = array<i64: 32, 128>}]} {
    %c0 = arith.constant 0 : index
    %c0_0 = arith.constant 0 : index
    %c0_1 = arith.constant 0 : index
    %0 = vector.load %arg2[%c0, %c0_0, %c0_1] : memref<3x32x128xi32, #tpu.memory_space<vmem>>, vector<1x32x128xi32>
    %1 = vector.shape_cast %0 : vector<1x32x128xi32> to vector<32x128xi32>
    %c1 = arith.constant 1 : index
    %c0_2 = arith.constant 0 : index
    %c0_3 = arith.constant 0 : index
    %2 = vector.load %arg2[%c1, %c0_2, %c0_3] : memref<3x32x128xi32, #tpu.memory_space<vmem>>, vector<1x32x128xi32>
    %3 = vector.shape_cast %2 : vector<1x32x128xi32> to vector<32x128xi32>
    %c2 = arith.constant 2 : index
    %c0_4 = arith.constant 0 : index
    %c0_5 = arith.constant 0 : index
    %4 = vector.load %arg2[%c2, %c0_4, %c0_5] : memref<3x32x128xi32, #tpu.memory_space<vmem>>, vector<1x32x128xi32>
    %5 = vector.shape_cast %4 : vector<1x32x128xi32> to vector<32x128xi32>
    %c0_6 = arith.constant 0 : index
    %6 = memref.load %arg1[%c0_6] : memref<6xi32, #tpu.memory_space<smem>>
    %c1_7 = arith.constant 1 : index
    %7 = memref.load %arg1[%c1_7] : memref<6xi32, #tpu.memory_space<smem>>
    %c2_8 = arith.constant 2 : index
    %8 = memref.load %arg1[%c2_8] : memref<6xi32, #tpu.memory_space<smem>>
    %c3 = arith.constant 3 : index
    %9 = memref.load %arg1[%c3] : memref<6xi32, #tpu.memory_space<smem>>
    %c4 = arith.constant 4 : index
    %10 = memref.load %arg1[%c4] : memref<6xi32, #tpu.memory_space<smem>>
    %c5 = arith.constant 5 : index
    %11 = memref.load %arg1[%c5] : memref<6xi32, #tpu.memory_space<smem>>
    %12 = vector.broadcast %6 : i32 to vector<32x128xi32>
    %13 = arith.cmpi sge, %1, %12 : vector<32x128xi32>
    %14 = vector.broadcast %9 : i32 to vector<32x128xi32>
    %15 = arith.cmpi slt, %1, %14 : vector<32x128xi32>
    %16 = arith.andi %13, %15 : vector<32x128xi1>
    %17 = vector.broadcast %7 : i32 to vector<32x128xi32>
    %18 = arith.cmpi sge, %3, %17 : vector<32x128xi32>
    %19 = vector.broadcast %10 : i32 to vector<32x128xi32>
    %20 = arith.cmpi slt, %3, %19 : vector<32x128xi32>
    %21 = arith.andi %18, %20 : vector<32x128xi1>
    %22 = arith.andi %16, %21 : vector<32x128xi1>
    %23 = vector.broadcast %8 : i32 to vector<32x128xi32>
    %24 = arith.cmpi sge, %5, %23 : vector<32x128xi32>
    %25 = vector.broadcast %11 : i32 to vector<32x128xi32>
    %26 = arith.cmpi slt, %5, %25 : vector<32x128xi32>
    %27 = arith.andi %24, %26 : vector<32x128xi1>
    %28 = arith.andi %22, %27 : vector<32x128xi1>
    %c1_i32 = arith.constant 1 : i32
    %c0_i32 = arith.constant 0 : i32
    %29 = vector.broadcast %c1_i32 : i32 to vector<32x128xi32>
    %30 = vector.broadcast %c0_i32 : i32 to vector<32x128xi32>
    %31 = arith.select %28, %29, %30 : vector<32x128xi1>, vector<32x128xi32>
    %32 = arith.trunci %31 : vector<32x128xi32> to vector<32x128xi8>
    %c0_9 = arith.constant 0 : index
    %c0_10 = arith.constant 0 : index
    %33 = vector.load %arg3[%c0_9, %c0_10] : memref<32x128xi8, #tpu.memory_space<vmem>>, vector<32x128xi8>
    tpu.vector_store %arg3[%c0_9, %c0_10], %32 {strides = array<i32>} : memref<32x128xi8, #tpu.memory_space<vmem>>, vector<32x128xi8>,
    return
  }
  func.func @transform_0(%arg0: i32) -> i32 {
    %c0_i32 = arith.constant 0 : i32
    %c0_i32_0 = arith.constant 0 : i32
    return %c0_i32 : i32
  }
  func.func @transform_1(%arg0: i32) -> (i32, i32, i32) {
    %c0_i32 = arith.constant 0 : i32
    %c0_i32_0 = arith.constant 0 : i32
    %c0_i32_1 = arith.constant 0 : i32
    return %c0_i32, %arg0, %c0_i32_0 : i32, i32, i32
  }
  func.func @transform_2(%arg0: i32) -> (i32, i32) {
    %c0_i32 = arith.constant 0 : i32
    %c0_i32_0 = arith.constant 0 : i32
    return %arg0, %c0_i32 : i32, i32
  }
}

</mosaic_0001>

<llo_original>
// kernel: tpu_custom_call.1
$region0: #{tpu_custom_call.1}
  #allocation0 [shape = 'u32[]', space=smem, size = 0x4, offset = 0x4, fixed_abs, tag = 'smem constant byte address 0x4 - core index']
  #allocation1 [shape = 'u32[72,128]{1,0:T(1,128)}', space=vmem, size = 0x9000, scoped, tag = 'internal scratch']
  %s0 = inlined_call_operand.hbm [shape: s32[6], index: 0, kind: input, shape index: {}]
  %s1 = inlined_call_operand.hbm [shape: s32[3,32,128], index: 1, kind: input, shape index: {}]
  %s2 = inlined_call_operand.hbm [shape: s8[32,128], index: 2, kind: output, shape index: {}]
  %s3 = sld [smem:[#allocation0]]
  $region26: #{tpu_custom_call.1} parent=0
    _
  %s5 = ssub.s32 1, %s3
  %s6 = scalar_select 0, %s5, %s3
  $region1: #{tpu_custom_call.1} parent=0
    #allocation2 [shape = 'u8[512]{0}', space=smem, size = 0x200, scoped, tag = 'input window, operand 0, single buffered']
    #allocation3 [shape = 's32[1]{0}', space=sflag, size = 0x4, scoped, tag = 'scoped memory for tpu_custom_call.1']
    #allocation4 [shape = 's32[1]{0}', space=sflag, size = 0x4, scoped, tag = 'scoped memory for tpu_custom_call.1']
    #allocation5 [shape = 's32[1]{0}', space=sflag, size = 0x4, scoped, tag = 'scoped memory for tpu_custom_call.1']
    #allocation6 [shape = 'u8[49152]{0}', space=vmem, size = 0xc000, scoped, tag = 'input window, operand 1, single buffered']
    #allocation7 [shape = 'u8[4096]{0}', space=vmem, size = 0x1000, scoped, tag = 'output window, operand 0, single buffered']
    %7 = vsyncpa [#allocation5], 0
    %8 = vsyncpa [#allocation3], 0
    %9 = vsyncpa [#allocation4], 0
    // Predicated region
    $region2: #{tpu_custom_call.1} parent=1 // pred_check
      _
    $region3: #{tpu_custom_call.1} parent=1 // pred_check_branch
      %11 = sbr.rel (0) target = $region5
    $region4: #{tpu_custom_call.1} parent=1 // pred_region
      %13 = vsyncadd [#allocation5], 0
      %s15 = sshll.u32 %s0, 4
      %s16 = int_to_ptr.hbm [resolvable:$true] %s15
      %18 = dma.hbm_to_smem %s16, 16, [#allocation2], [#allocation5]
    $region5: #{tpu_custom_call.1} parent=1 // pred_fallthru
      _
    // Predicated region
    $region6: #{tpu_custom_call.1} parent=1 // pred_check
      _
    $region7: #{tpu_custom_call.1} parent=1 // pred_check_branch
      %20 = sbr.rel (0) target = $region9
    $region8: #{tpu_custom_call.1} parent=1 // pred_region
      %22 = vsyncadd [#allocation3], 0
      %s23 = sshll.u32 %s1, 4
      %s24 = int_to_ptr.hbm [resolvable:$true] %s23
      %s25 = sshll.u32 [#allocation6], 4
      %s26 = int_to_ptr.vmem [resolvable:$true] %s25
      %31 = dma.hbm_to_vmem [thread:$0]  %s24, 1536, %s26, [#allocation3], 128, 128, 8
    $region9: #{tpu_custom_call.1} parent=1 // pred_fallthru
      _
    // Predicated region
    $region10: #{tpu_custom_call.1} parent=1 // pred_check
      _
    $region11: #{tpu_custom_call.1} parent=1 // pred_check_branch
      %33 = sbr.rel (0) target = $region13
    $region12: #{tpu_custom_call.1} parent=1 // pred_region
      %35 = dma.done [#allocation5], 16
    $region13: #{tpu_custom_call.1} parent=1 // pred_fallthru
      _
    // Predicated region
    $region14: #{tpu_custom_call.1} parent=1 // pred_check
      _
    $region15: #{tpu_custom_call.1} parent=1 // pred_check_branch
      %37 = sbr.rel (0) target = $region17
    $region16: #{tpu_custom_call.1} parent=1 // pred_region
      %39 = dma.done [#allocation3], 1536
    $region17: #{tpu_custom_call.1} parent=1 // pred_fallthru
      _
    %40 = sfence
    %v41 = vld [vmem:[#allocation6] sm:$0xff]
    %v42 = vld [vmem:[#allocation6 + $0x8] sm:$0xff]
    %v43 = vld [vmem:[#allocation6 + $0x10] sm:$0xff]
    %v44 = vld [vmem:[#allocation6 + $0x18] sm:$0xff]
    %s45 = scalar_lea.vmem [#allocation6], 32
    %v46 = vld [vmem:[%s45] sm:$0xff]
    %v47 = vld [vmem:[%s45 + $0x8] sm:$0xff]
    %v48 = vld [vmem:[%s45 + $0x10] sm:$0xff]
    %v49 = vld [vmem:[%s45 + $0x18] sm:$0xff]
    %s50 = scalar_lea.vmem [#allocation6], 64
    %v51 = vld [vmem:[%s50] sm:$0xff]
    %v52 = vld [vmem:[%s50 + $0x8] sm:$0xff]
    %v53 = vld [vmem:[%s50 + $0x10] sm:$0xff]
    %v54 = vld [vmem:[%s50 + $0x18] sm:$0xff]
    %s55 = sld [smem:[#allocation2]]
    %s56 = sld [smem:[#allocation2 + $0x1]]
    %s57 = sld [smem:[#allocation2 + $0x2]]
    %s58 = sld [smem:[#allocation2 + $0x3]]
    %s59 = sld [smem:[#allocation2 + $0x4]]
    %s60 = sld [smem:[#allocation2 + $0x5]]
    %v61 = vstv %s55
    %vm62 = vcmp.ge.s32.totalorder %v41, %v61
    %vm63 = vcmp.ge.s32.totalorder %v42, %v61
    %vm64 = vcmp.ge.s32.totalorder %v43, %v61
    %vm65 = vcmp.ge.s32.totalorder %v44, %v61
    %v66 = vstv %s58
    %vm67 = vcmp.lt.s32.totalorder %v41, %v66
    %vm68 = vcmp.lt.s32.totalorder %v42, %v66
    %vm69 = vcmp.lt.s32.totalorder %v43, %v66
    %vm70 = vcmp.lt.s32.totalorder %v44, %v66
    %vm71 = vmand %vm62, %vm67
    %vm72 = vmand %vm63, %vm68
    %vm73 = vmand %vm64, %vm69
    %vm74 = vmand %vm65, %vm70
    %v75 = vstv %s56
    %vm76 = vcmp.ge.s32.totalorder %v46, %v75
    %vm77 = vcmp.ge.s32.totalorder %v47, %v75
    %vm78 = vcmp.ge.s32.totalorder %v48, %v75
    %vm79 = vcmp.ge.s32.totalorder %v49, %v75
    %v80 = vstv %s59
    %vm81 = vcmp.lt.s32.totalorder %v46, %v80
    %vm82 = vcmp.lt.s32.totalorder %v47, %v80
    %vm83 = vcmp.lt.s32.totalorder %v48, %v80
    %vm84 = vcmp.lt.s32.totalorder %v49, %v80
    %vm85 = vmand %vm76, %vm81
    %vm86 = vmand %vm77, %vm82
    %vm87 = vmand %vm78, %vm83
    %vm88 = vmand %vm79, %vm84
    %vm89 = vmand %vm71, %vm85
    %vm90 = vmand %vm72, %vm86
    %vm91 = vmand %vm73, %vm87
    %vm92 = vmand %vm74, %vm88
    %v93 = vstv %s57
    %vm94 = vcmp.ge.s32.totalorder %v51, %v93
    %vm95 = vcmp.ge.s32.totalorder %v52, %v93
    %vm96 = vcmp.ge.s32.totalorder %v53, %v93
    %vm97 = vcmp.ge.s32.totalorder %v54, %v93
    %v98 = vstv %s60
    %vm99 = vcmp.lt.s32.totalorder %v51, %v98
    %vm100 = vcmp.lt.s32.totalorder %v52, %v98
    %vm101 = vcmp.lt.s32.totalorder %v53, %v98
    %vm102 = vcmp.lt.s32.totalorder %v54, %v98
    %vm103 = vmand %vm94, %vm99
    %vm104 = vmand %vm95, %vm100
    %vm105 = vmand %vm96, %vm101
    %vm106 = vmand %vm97, %vm102
    %vm107 = vmand %vm89, %vm103
    %vm108 = vmand %vm90, %vm104
    %vm109 = vmand %vm91, %vm105
    %vm110 = vmand %vm92, %vm106
    %v111 = vsel %vm107, 1, 0
    %v112 = vsel %vm108, 1, 0
    %v113 = vsel %vm109, 1, 0
    %v114 = vsel %vm110, 1, 0
    %v115 = vpack.c.b16 %v112, %v111
    %v116 = vpack.c.b16 %v114, %v113
    %v117 = vpack.c.b8 %v116, %v115
    %118 = vst [vmem:[#allocation7] sm:$0xff] %v117
    // Predicated region
    $region18: #{tpu_custom_call.1} parent=1 // pred_check
      _
    $region19: #{tpu_custom_call.1} parent=1 // pred_check_branch
      %120 = sbr.rel (0) target = $region21
    $region20: #{tpu_custom_call.1} parent=1 // pred_region
      %122 = vsyncadd [#allocation4], 0
      %s124 = sshll.u32 [#allocation7], 4
      %s125 = int_to_ptr.vmem [resolvable:$true] %s124
      %s126 = sshll.u32 %s2, 4
      %s127 = int_to_ptr.hbm [resolvable:$true] %s126
      %129 = dma.vmem_to_hbm [thread:$0]  %s125, 128, %s127, [#allocation4]
    $region21: #{tpu_custom_call.1} parent=1 // pred_fallthru
      _
    // Predicated region
    $region22: #{tpu_custom_call.1} parent=1 // pred_check
      _
    $region23: #{tpu_custom_call.1} parent=1 // pred_check_branch
      %131 = sbr.rel (0) target = $region25
    $region24: #{tpu_custom_call.1} parent=1 // pred_region
      %133 = dma.done [#allocation4], 128
    $region25: #{tpu_custom_call.1} parent=1 // pred_fallthru
      _
    %134 = vsyncpa [#allocation3], 1
    %135 = vsyncpa [#allocation4], 1
    %136 = vsyncpa [#allocation5], 1

</llo_original>
